<compile_context>
chip_gen: v5e
topology: v5e:2x2
jax: 0.10.0
libtpu: 0.0.40
codegen_flags: <defaults>
</compile_context>

<pallas_src>
import functools

import jax
import jax.numpy as jnp
import numpy as np
from jax.experimental import pallas as pl
from jax.experimental.pallas import tpu as pltpu


_ROLL_SIGN_CACHE = {}


def _lane_roll_sign():
    """Probe pltpu.roll's rotation convention once (cached).

    Returns s such that, for a Python-int offset `off` and lane size M,
        pltpu.roll(v, (s * off) % M, axis=-1)[..., p] == v[..., (p + off) % M]
    (jnp.roll convention => s == -1).
    """
    if "sign" not in _ROLL_SIGN_CACHE:
        def probe(x_ref, o_ref):
            o_ref[...] = pltpu.roll(x_ref[...], 1, axis=1)

        x = jnp.tile(jnp.arange(128, dtype=jnp.float32)[None, :], (8, 1))
        r = pl.pallas_call(
            probe, out_shape=jax.ShapeDtypeStruct((8, 128), jnp.float32))(x)
        # jnp.roll convention: out[p] == x[p - 1]  =>  out[0, 1] == 0.
        _ROLL_SIGN_CACHE["sign"] = -1 if float(r[0, 1]) == 0.0 else 1
    return _ROLL_SIGN_CACHE["sign"]


def bottleneck_kernel(x_ref, w1_ref, w2_ref, w3_ref, b_ref, o_ref, *,
                      H, W, roll_sign, mxu_dtype):
    # x_ref block: (bb, Cin, M) f32, M = H*W on the lane axis.
    # Weights are BN-scale-folded and sublane-tile padded (see wrapper):
    #   w1_ref: (Ppad, Cin)        conv1 (1x1); rows >= P are zero
    #   w2_ref: (Ppad, 9*Ppad)     conv2 (3x3) im2col, column = tap*Ppad + c_in
    #   w3_ref: (Cout, Ppad)       conv3 (1x1, expansion); cols >= P are zero
    #   b_ref : (max(Cout,Ppad),3) packed biases  [:,0]=b1  [:,1]=b2  [:,2]=b3
    bb, _, M = x_ref.shape
    Ppad = w1_ref.shape[0]
    Cout = w3_ref.shape[0]

    b1 = b_ref[0:Ppad, 0:1]
    b2 = b_ref[0:Ppad, 1:2]
    b3 = b_ref[0:Cout, 2:3]

    # Boundary-validity masks: computed once, shared by all taps and images.
    pix = jax.lax.broadcasted_iota(jnp.int32, (1, M), 1)
    px, py = pix % W, pix // W
    col_ok = {-1: px >= 1, 1: px <= W - 2}
    row_ok = {-1: py >= 1, 1: py <= H - 2}
    taps = [(-1, -1), (-1, 0), (-1, 1), (0, -1), (0, 0), (0, 1),
            (1, -1), (1, 0), (1, 1)]
    tap_masks = []
    for dy, dx in taps:
        m = None
        if dy != 0:
            m = row_ok[dy]
        if dx != 0:
            m = col_ok[dx] if m is None else (m & col_ok[dx])
        tap_masks.append(m)

    for b in range(bb):                    # bb is small & static -> unrolled
        x = x_ref[b]                                          # (Cin, M) f32

        # ---- conv1 (1x1) + bn1(bias) + relu ----------------------------
        h1 = jnp.dot(w1_ref[...], x.astype(mxu_dtype),
                     preferred_element_type=jnp.float32)      # (Ppad, M) f32
        h1 = jnp.maximum(h1 + b1, 0.0)                        # pad rows stay 0

        # ---- conv2 (3x3, s=1, p=1): im2col via in-vreg lane rolls ------
        # tap[:, p] = h1[:, p + dy*W + dx] when (y+dy, x+dx) is in-bounds,
        # else 0.  Rolls run on the XLU (idle slot here); the masks kill both
        # the zero-padding positions and the roll wrap-around.  Each tap is a
        # whole sublane tile, so the concatenate is a tile-aligned vreg stack
        # (no relayout, no VMEM scratch round-trip).
        cols = []
        for (dy, dx), m in zip(taps, tap_masks):
            off = dy * W + dx
            t = h1 if off == 0 else pltpu.roll(h1, (roll_sign * off) % M, 1)
            if m is not None:
                t = jnp.where(m, t, 0.0)
            cols.append(t.astype(mxu_dtype))
        patch = jnp.concatenate(cols, axis=0)                 # (9*Ppad, M)

        h2 = jnp.dot(w2_ref[...], patch,
                     preferred_element_type=jnp.float32)      # (Ppad, M) f32
        h2 = jnp.maximum(h2 + b2, 0.0)

        # ---- conv3 (1x1, expansion) + bn3(bias) + residual + relu ------
        h3 = jnp.dot(w3_ref[...], h2.astype(mxu_dtype),
                     preferred_element_type=jnp.float32)      # (Cout, M) f32
        o_ref[b] = jnp.maximum(h3 + b3 + x, 0.0).astype(o_ref.dtype)


def bottleneck(x_nchw, w1, w2, w3, bn1, bn2, bn3, *, eps=1e-5,
               mxu_dtype=jnp.float32, grid_steps=None):
    """HRNet Bottleneck forward (eval-mode BN), NCHW in / NCHW out.

    x_nchw : (B, Cin, H, W) float32
    w1     : (P, Cin, 1, 1), w2: (P, P, 3, 3), w3: (Cout, P, 1, 1)  (OIHW)
    bn{1,2,3}: (gamma, beta, running_mean, running_var)
    mxu_dtype : jnp.float32 (default; closest to PyTorch fp32) or jnp.bfloat16
                (recommended on v6e/v7x: bf16-native MXU; elementwise math and
                accumulation stay f32).
    grid_steps: number of grid steps the batch is split over.  Default: 2 when
                B is even (one image block per v7x TensorCore), else 1.  Set
                to 1 on single-TC v5e/v6e to fold the batch into one step.
    """
    B, Cin, H, W = x_nchw.shape
    P = w1.shape[0]
    Cout = w3.shape[0]
    assert Cout == Cin, "identity residual requires inplanes == planes*expansion"
    HW = H * W

    if grid_steps is None:
        grid_steps = 2 if (B >= 2 and B % 2 == 0) else 1
    assert B % grid_steps == 0, "grid_steps must divide the batch"
    bb = B // grid_steps

    # Sublane-tile row count for the MXU dtype: f32 packs 8 rows per (8,128)
    # tile, bf16 packs 16.  Padding P -> Ppad makes every im2col tap a whole
    # tile so all in-kernel stacks are unmasked & tile-aligned.
    sub = 8 if np.dtype(mxu_dtype).itemsize == 4 else 16
    Ppad = ((P + sub - 1) // sub) * sub

    def fold(gamma, beta, mean, var):
        s = gamma / jnp.sqrt(var + eps)
        return s, beta - mean * s

    s1, b1 = fold(*bn1)
    s2, b2 = fold(*bn2)
    s3, b3 = fold(*bn3)

    # Fold BN scales into the conv weights and zero-pad channel dims to Ppad
    # (parameter-time constant fold; zero rows/cols keep padded activation
    # rows exactly zero, so results are unchanged).
    w1f = jnp.zeros((Ppad, Cin), jnp.float32).at[:P].set(
        w1.reshape(P, Cin) * s1[:, None]).astype(mxu_dtype)
    w2_tap = jnp.transpose(w2 * s2[:, None, None, None], (0, 2, 3, 1))  # (P,3,3,P)
    w2f = jnp.zeros((Ppad, 3, 3, Ppad), jnp.float32).at[:P, :, :, :P].set(
        w2_tap).reshape(Ppad, 9 * Ppad).astype(mxu_dtype)
    w3f = jnp.zeros((Cout, Ppad), jnp.float32).at[:, :P].set(
        w3.reshape(Cout, P) * s3[:, None]).astype(mxu_dtype)

    # Pack the three bias vectors into one tiny array (one DMA, not three).
    rows = max(Cout, Ppad)
    bpack = jnp.zeros((rows, 3), jnp.float32)
    bpack = bpack.at[:P, 0].set(b1).at[:P, 1].set(b2).at[:Cout, 2].set(b3)

    x_flat = x_nchw.reshape(B, Cin, HW)          # free reshape; lane dim = H*W

    kernel = functools.partial(bottleneck_kernel, H=H, W=W,
                               roll_sign=_lane_roll_sign(), mxu_dtype=mxu_dtype)

    def full(a):
        nd = a.ndim
        return pl.BlockSpec(a.shape, lambda g, nd=nd: (0,) * nd)

    wbytes = sum(int(np.prod(a.shape)) * a.dtype.itemsize
                 for a in (w1f, w2f, w3f, bpack))
    cost = pl.CostEstimate(
        flops=2 * B * HW * (Ppad * Cin + Ppad * 9 * Ppad + Cout * Ppad)
        + 6 * B * Cout * HW,
        transcendentals=0,
        bytes_accessed=4 * B * HW * (Cin + Cout) + wbytes)

    out_flat = pl.pallas_call(
        kernel,
        out_shape=jax.ShapeDtypeStruct((B, Cout, HW), x_nchw.dtype),
        grid_spec=pltpu.PrefetchScalarGridSpec(
            num_scalar_prefetch=0,
            grid=(grid_steps,),                  # images-per-step = B // steps
            in_specs=[
                pl.BlockSpec((bb, Cin, HW), lambda g: (g, 0, 0)),
                full(w1f), full(w2f), full(w3f), full(bpack),
            ],
            out_specs=pl.BlockSpec((bb, Cout, HW), lambda g: (g, 0, 0)),
        ),
        compiler_params=pltpu.CompilerParams(
            dimension_semantics=("parallel",),   # feeds both TCs on v7x
        ),
        cost_estimate=cost,
    )(x_flat, w1f, w2f, w3f, bpack)
    return out_flat.reshape(B, Cout, H, W)


def _reference(x, w1, w2, w3, bn1, bn2, bn3, eps=1e-5):
    # Pure-JAX NCHW reference (eval-mode BN), independent of the folded params.
    def bn(h, p):
        g, b, m, v = p
        s = g / jnp.sqrt(v + eps)
        return h * s[None, :, None, None] + (b - m * s)[None, :, None, None]

    dn = ('NCHW', 'OIHW', 'NCHW')
    hi = jax.lax.Precision.HIGHEST
    h = jax.lax.conv_general_dilated(x, w1, (1, 1), 'VALID',
                                     dimension_numbers=dn, precision=hi)
    h = jnp.maximum(bn(h, bn1), 0.0)
    h = jax.lax.conv_general_dilated(h, w2, (1, 1), ((1, 1), (1, 1)),
                                     dimension_numbers=dn, precision=hi)
    h = jnp.maximum(bn(h, bn2), 0.0)
    h = jax.lax.conv_general_dilated(h, w3, (1, 1), 'VALID',
                                     dimension_numbers=dn, precision=hi)
    h = bn(h, bn3)
    return jnp.maximum(h + x, 0.0)


if __name__ == "__main__":
    # Bottleneck(inplanes=16, planes=4): expansion 4 -> out channels = 16 =
    # inplanes, so downsample=None (identity residual), as in the HRNet stem.
    B, H, W = 2, 16, 16
    inplanes, planes, expansion = 16, 4, 4
    Cout = planes * expansion

    key = jax.random.PRNGKey(0)
    ks = jax.random.split(key, 8)

    x = jax.random.normal(ks[0], (B, inplanes, H, W), jnp.float32)     # NCHW

    w1 = jax.random.normal(ks[1], (planes, inplanes, 1, 1), jnp.float32) * 0.1
    w2 = jax.random.normal(ks[2], (planes, planes, 3, 3), jnp.float32) * 0.1
    w3 = jax.random.normal(ks[3], (Cout, planes, 1, 1), jnp.float32) * 0.1

    def bn_params(k, c):
        k1, k2, k3, k4 = jax.random.split(k, 4)
        gamma = 1.0 + 0.1 * jax.random.normal(k1, (c,), jnp.float32)
        beta = 0.1 * jax.random.normal(k2, (c,), jnp.float32)
        mean = 0.1 * jax.random.normal(k3, (c,), jnp.float32)
        var = jnp.abs(jax.random.normal(k4, (c,), jnp.float32)) + 0.5
        return gamma, beta, mean, var

    bn1 = bn_params(ks[4], planes)
    bn2 = bn_params(ks[5], planes)
    bn3 = bn_params(ks[6], Cout)

    ref = _reference(x, w1, w2, w3, bn1, bn2, bn3)

    # f32 MXU path; batch split over 2 parallel grid steps (v7x: one per TC).
    out = bottleneck(x, w1, w2, w3, bn1, bn2, bn3)
    out = jax.block_until_ready(out)
    np.testing.assert_allclose(np.asarray(out), np.asarray(ref),
                               rtol=2e-4, atol=2e-4)

    # bf16 MXU path (recommended on v6e/v7x) with the whole batch folded into
    # a single grid step (recommended on single-TensorCore v5e/v6e).
    out_bf16 = bottleneck(x, w1, w2, w3, bn1, bn2, bn3,
                          mxu_dtype=jnp.bfloat16, grid_steps=1)
    out_bf16 = jax.block_until_ready(out_bf16)
    np.testing.assert_allclose(np.asarray(out_bf16), np.asarray(ref),
                               rtol=5e-2, atol=5e-2)

    print("KERNEL_OK")
</pallas_src>

<mosaic_0001>
module attributes {stable_mosaic.version = 11 : i64} {
  func.func @probe(%arg0: memref<8x128xf32, #tpu.memory_space<vmem>>, %arg1: memref<8x128xf32, #tpu.memory_space<vmem>>) attributes {dimension_semantics = [], scalar_prefetch = 0 : i64, scratch_operands = 0 : i64, tpu.core_type = #tpu.core_type<tc>} {
    %c0 = arith.constant 0 : index
    %c0_0 = arith.constant 0 : index
    %0 = vector.load %arg0[%c0, %c0_0] : memref<8x128xf32, #tpu.memory_space<vmem>>, vector<8x128xf32>
    %c1_i32 = arith.constant 1 : i32
    %1 = tpu.dynamic_rotate %0 by %c1_i32 dim 1 : vector<8x128xf32>, i32 -> vector<8x128xf32>
    %c0_1 = arith.constant 0 : index
    %c0_2 = arith.constant 0 : index
    %2 = vector.load %arg1[%c0_1, %c0_2] : memref<8x128xf32, #tpu.memory_space<vmem>>, vector<8x128xf32>
    tpu.vector_store %arg1[%c0_1, %c0_2], %1 {strides = array<i32>} : memref<8x128xf32, #tpu.memory_space<vmem>>, vector<8x128xf32>,
    return
  }
}

</mosaic_0001>

<llo_original>
// kernel: tpu_custom_call.1
$region0: #{tpu_custom_call.1}
  #allocation0 [shape = 'u32[]', space=smem, size = 0x4, offset = 0x4, fixed_abs, tag = 'smem constant byte address 0x4 - core index']
  #allocation1 [shape = 'u32[72,128]{1,0:T(1,128)}', space=vmem, size = 0x9000, scoped, tag = 'internal scratch']
  %s0 = inlined_call_operand.hbm [shape: f32[8,128], index: 0, kind: input, shape index: {}]
  %s1 = inlined_call_operand.hbm [shape: f32[8,128], index: 1, kind: output, shape index: {}]
  %s2 = sld [smem:[#allocation0]]
  $region18: #{tpu_custom_call.1} parent=0
    _
  %s4 = ssub.s32 1, %s2
  %s5 = scalar_select 0, %s4, %s2
  $region1: #{tpu_custom_call.1} parent=0
    #allocation2 [shape = 'u8[4096]{0}', space=vmem, size = 0x1000, scoped, tag = 'input window, operand 0, single buffered']
    #allocation3 [shape = 's32[1]{0}', space=sflag, size = 0x4, scoped, tag = 'scoped memory for tpu_custom_call.1']
    #allocation4 [shape = 's32[1]{0}', space=sflag, size = 0x4, scoped, tag = 'scoped memory for tpu_custom_call.1']
    #allocation5 [shape = 'u8[4096]{0}', space=vmem, size = 0x1000, scoped, tag = 'output window, operand 0, single buffered']
    %6 = vsyncpa [#allocation3], 0
    %7 = vsyncpa [#allocation4], 0
    // Predicated region
    $region2: #{tpu_custom_call.1} parent=1 // pred_check
      _
    $region3: #{tpu_custom_call.1} parent=1 // pred_check_branch
      %9 = sbr.rel (0) target = $region5
    $region4: #{tpu_custom_call.1} parent=1 // pred_region
      %11 = vsyncadd [#allocation3], 0
      %s13 = sshll.u32 %s0, 4
      %s14 = int_to_ptr.hbm [resolvable:$true] %s13
      %s15 = sshll.u32 [#allocation2], 4
      %s16 = int_to_ptr.vmem [resolvable:$true] %s15
      %18 = dma.hbm_to_vmem [thread:$0]  %s14, 128, %s16, [#allocation3]
    $region5: #{tpu_custom_call.1} parent=1 // pred_fallthru
      _
    // Predicated region
    $region6: #{tpu_custom_call.1} parent=1 // pred_check
      _
    $region7: #{tpu_custom_call.1} parent=1 // pred_check_branch
      %20 = sbr.rel (0) target = $region9
    $region8: #{tpu_custom_call.1} parent=1 // pred_region
      %22 = dma.done [#allocation3], 128
    $region9: #{tpu_custom_call.1} parent=1 // pred_fallthru
      _
    %v23 = vld [vmem:[#allocation2] sm:$0xff]
    %24 = vrot.lane.b32.xlu0 %v23, 1
    %v25 = vpop.permute.xlu0 %24
    %26 = vst [vmem:[#allocation5] sm:$0xff] %v25
    // Predicated region
    $region10: #{tpu_custom_call.1} parent=1 // pred_check
      _
    $region11: #{tpu_custom_call.1} parent=1 // pred_check_branch
      %28 = sbr.rel (0) target = $region13
    $region12: #{tpu_custom_call.1} parent=1 // pred_region
      %30 = vsyncadd [#allocation4], 0
      %s32 = sshll.u32 [#allocation5], 4
      %s33 = int_to_ptr.vmem [resolvable:$true] %s32
      %s34 = sshll.u32 %s1, 4
      %s35 = int_to_ptr.hbm [resolvable:$true] %s34
      %37 = dma.vmem_to_hbm [thread:$0]  %s33, 128, %s35, [#allocation4]
    $region13: #{tpu_custom_call.1} parent=1 // pred_fallthru
      _
    // Predicated region
    $region14: #{tpu_custom_call.1} parent=1 // pred_check
      _
    $region15: #{tpu_custom_call.1} parent=1 // pred_check_branch
      %39 = sbr.rel (0) target = $region17
    $region16: #{tpu_custom_call.1} parent=1 // pred_region
      %41 = dma.done [#allocation4], 128
    $region17: #{tpu_custom_call.1} parent=1 // pred_fallthru
      _
    %42 = vsyncpa [#allocation3], 1
    %43 = vsyncpa [#allocation4], 1

</llo_original>
